<compile_context>
chip_gen: v5e
topology: v5e:2x2
jax: 0.10.0
libtpu: 0.0.40
codegen_flags: <defaults>
</compile_context>

<pallas_src>
import functools

import jax
import jax.numpy as jnp
from jax.experimental import pallas as pl
from jax.experimental.pallas import tpu as pltpu


def _releminer_kernel(tc_ref, x_ref, out_ref):
    """Fused time-encoding + folded linear head (batch on lanes).

    tc_ref : (Td, 4)  packed constants, cols = [time_w, time_b, Wt[:,0], Wt[:,1]]
    x_ref  : (3, bt)  rows = [folded-gather sum class0, class1, raw time t]
    out_ref: (2, bt)  logits (class on sublanes, batch on lanes).
    """
    tw = tc_ref[:, 0:1]          # (Td, 1)
    tb = tc_ref[:, 1:2]          # (Td, 1)
    w0 = tc_ref[:, 2:3]          # (Td, 1)
    w1 = tc_ref[:, 3:4]          # (Td, 1)

    t = x_ref[2:3, :]            # (1, bt)   raw time, batch on lanes
    # TimeEncoder: cos(t * w + b) -> (Td, bt).  EUP handles cos; the Td->2
    # contraction is a broadcast-multiply + sublane reduce (VPU/XLU, no MXU).
    time_emb = jnp.cos(tw * t + tb)

    c0 = jnp.sum(time_emb * w0, axis=0, keepdims=True)   # (1, bt)
    c1 = jnp.sum(time_emb * w1, axis=0, keepdims=True)   # (1, bt)

    # Write rows directly -- no concatenate / relayout before the store.
    out_ref[0:1, :] = x_ref[0:1, :] + c0
    out_ref[1:2, :] = x_ref[1:2, :] + c1


def fold_params(params):
    """One-time (offline) fold of the linear head into the embedding tables.

    Tables are stored transposed (class on sublanes, vocab on lanes) so the
    per-example gathers in the wrapper directly produce lane-dense (2, B).
    """
    p_text1_t = (params["text_emb"] @ params["w1"]).T                    # (2, A)
    p_text2_t = (params["text_emb"] @ params["w2"]).T                    # (2, A)
    p_node_t = (params["node_emb"] @ params["wg"] + params["bias"]).T    # (2, N)
    tconst = jnp.concatenate(
        [params["time_w"].T, params["time_b"].T, params["wt"]], axis=1
    ).astype(jnp.float32)                                                # (Td, 4)
    return dict(p_text1_t=p_text1_t.astype(jnp.float32),
                p_text2_t=p_text2_t.astype(jnp.float32),
                p_node_t=p_node_t.astype(jnp.float32),
                tconst=tconst)


@functools.partial(jax.jit, static_argnames=("block_b", "min_pallas_batch"))
def releminer_forward(text1, text2, graph_data, time_data, folded, *,
                      block_b=16384, min_pallas_batch=2048):
    """JAX wrapper reproducing ReleMinerPT.forward (return_emb=False).

    (`scene_text` is unused by the original PyTorch forward, so it is omitted.)
    """
    B = text1.shape[0]
    tc = folded["tconst"]
    td = tc.shape[0]

    # Wrapper glue: gathers from the pre-transposed folded width-2 tables are
    # already lane-dense (2, B); no transpose, no full-array pad.
    g = (jnp.take(folded["p_text1_t"], text1, axis=1)
         + jnp.take(folded["p_text2_t"], text2, axis=1)
         + jnp.take(folded["p_node_t"], graph_data, axis=1))             # (2, B)
    t_row = time_data.reshape(1, B).astype(jnp.float32)                  # (1, B)

    # Small-batch fast path: launch cost would dominate, run fused XLA instead.
    if B < max(128, min_pallas_batch):
        time_emb = jnp.cos(tc[:, 0:1] * t_row + tc[:, 1:2])              # (Td, B)
        return (g + tc[:, 2:4].T @ time_emb).T                           # (B, 2)

    # Pack t as a third row so each grid step has one batch-sized input DMA.
    x = jnp.concatenate([g, t_row], axis=0)                              # (3, B)

    # Tile choice: big lane tiles (cap block_b), but at most ~half the batch
    # (128-aligned) so the "parallel" grid has >= 2 steps for v7x's 2 TCs.
    # Ragged last block is handled by Pallas' masked boundary writeback.
    half_lanes = max(128, ((B // 2) // 128) * 128)
    bt = min(block_b, half_lanes)
    grid = (pl.cdiv(B, bt),)

    out = pl.pallas_call(
        _releminer_kernel,
        out_shape=jax.ShapeDtypeStruct((2, B), jnp.float32),
        grid=grid,
        in_specs=[
            pl.BlockSpec((td, 4), lambda i: (0, 0)),   # packed time consts + Wt
            pl.BlockSpec((3, bt), lambda i: (0, i)),   # [gath0, gath1, t]
        ],
        out_specs=pl.BlockSpec((2, bt), lambda i: (0, i)),
        compiler_params=pltpu.CompilerParams(
            dimension_semantics=("parallel",)),
    )(tc, x)

    return out.T                                                          # (B, 2)


def _reference_forward(text1, text2, graph_data, time_data, params):
    """Pure-JAX reference of the same math (mirrors the PyTorch forward)."""
    e1 = jnp.take(params["text_emb"], text1, axis=0)
    e2 = jnp.take(params["text_emb"], text2, axis=0)
    g = jnp.take(params["node_emb"], graph_data, axis=0)
    t = time_data.reshape(-1, 1).astype(jnp.float32)
    time_emb = jnp.cos(t * params["time_w"] + params["time_b"])
    all_emb = jnp.concatenate([e1, e2, g, time_emb], axis=-1)
    w_full = jnp.concatenate(
        [params["w1"], params["w2"], params["wg"], params["wt"]], axis=0)
    return all_emb @ w_full + params["bias"]


def make_params(key, alarm_kpi_num, text_emb_dim, node_num, node_emb_dim,
                time_dim):
    ks = jax.random.split(key, 8)
    d_in = 2 * text_emb_dim + node_emb_dim + time_dim
    # Deterministic synthetic parameters (module __init__ shapes).
    text_emb = jax.random.normal(ks[0], (alarm_kpi_num, text_emb_dim),
                                 jnp.float32)  # "pretrained_emb"
    node_emb = jax.random.normal(ks[1], (node_num, node_emb_dim), jnp.float32)
    time_w = jax.random.normal(ks[2], (1, time_dim), jnp.float32)
    time_b = jax.random.normal(ks[3], (1, time_dim), jnp.float32)
    # nn.Linear(d_in, 2): store as (d_in, 2), split row-wise per segment.
    bound = 1.0 / jnp.sqrt(d_in)
    w_full = jax.random.uniform(ks[4], (d_in, 2), jnp.float32, -bound, bound)
    bias = jax.random.uniform(ks[5], (1, 2), jnp.float32, -bound, bound)
    w1 = w_full[:text_emb_dim]
    w2 = w_full[text_emb_dim:2 * text_emb_dim]
    wg = w_full[2 * text_emb_dim:2 * text_emb_dim + node_emb_dim]
    wt = w_full[2 * text_emb_dim + node_emb_dim:]
    return dict(text_emb=text_emb, node_emb=node_emb, time_w=time_w,
                time_b=time_b, w1=w1, w2=w2, wg=wg, wt=wt, bias=bias)


if __name__ == "__main__":
    key = jax.random.PRNGKey(0)
    ALARM_KPI_NUM = 50
    TEXT_EMB_DIM = 32
    NODE_NUM = 20
    NODE_EMB_DIM = 16
    TIME_DIM = 8

    kp, k1, k2, kg, kt = jax.random.split(key, 5)
    params = make_params(kp, ALARM_KPI_NUM, TEXT_EMB_DIM, NODE_NUM,
                         NODE_EMB_DIM, TIME_DIM)
    folded = fold_params(params)   # one-time weight fold

    # --- Pallas path: modest batch, deliberately NOT a multiple of 128 so the
    # ragged last block / masked writeback path is exercised.
    B = 300
    text1 = jax.random.randint(k1, (B,), 0, ALARM_KPI_NUM, jnp.int32)
    text2 = jax.random.randint(k2, (B,), 0, ALARM_KPI_NUM, jnp.int32)
    graph_data = jax.random.randint(kg, (B,), 0, NODE_NUM, jnp.int32)
    time_data = jax.random.uniform(kt, (B,), jnp.float32, 0.0, 100.0)

    preds = releminer_forward(text1, text2, graph_data, time_data, folded,
                              min_pallas_batch=1)   # force the Pallas path
    preds = jax.block_until_ready(preds)
    ref = _reference_forward(text1, text2, graph_data, time_data, params)
    assert preds.shape == (B, 2)
    assert jnp.allclose(preds, ref, atol=1e-4, rtol=1e-4), (preds, ref)

    # --- Small-batch fast path (pure fused XLA) sanity check.
    Bs = 8
    preds_s = releminer_forward(text1[:Bs], text2[:Bs], graph_data[:Bs],
                                time_data[:Bs], folded)
    preds_s = jax.block_until_ready(preds_s)
    ref_s = _reference_forward(text1[:Bs], text2[:Bs], graph_data[:Bs],
                               time_data[:Bs], params)
    assert preds_s.shape == (Bs, 2)
    assert jnp.allclose(preds_s, ref_s, atol=1e-4, rtol=1e-4), (preds_s, ref_s)

    print("KERNEL_OK")
</pallas_src>

<mosaic_0001>
module attributes {stable_mosaic.version = 11 : i64} {
  func.func @_releminer_kernel(%arg0: i32, %arg1: memref<8x4xf32, #tpu.memory_space<vmem>>, %arg2: memref<3x128xf32, #tpu.memory_space<vmem>>, %arg3: memref<2x128xf32, #tpu.memory_space<vmem>>) attributes {dimension_semantics = [#tpu.dimension_semantics<parallel>], iteration_bounds = array<i64: 3>, scalar_prefetch = 0 : i64, scratch_operands = 0 : i64, tpu.core_type = #tpu.core_type<tc>, window_params = [{pipeline_mode = #tpu.pipeline_mode<synchronous>, transform_indices = @transform_0, window_bounds = array<i64: 8, 4>}, {transform_indices = @transform_1, window_bounds = array<i64: 3, 128>}, {transform_indices = @transform_2, window_bounds = array<i64: 2, 128>}]} {
    %c0 = arith.constant 0 : index
    %c0_0 = arith.constant 0 : index
    %0 = vector.load %arg1[%c0, %c0_0] : memref<8x4xf32, #tpu.memory_space<vmem>>, vector<8x1xf32>
    %c0_1 = arith.constant 0 : index
    %c1 = arith.constant 1 : index
    %1 = vector.load %arg1[%c0_1, %c1] : memref<8x4xf32, #tpu.memory_space<vmem>>, vector<8x1xf32>
    %c0_2 = arith.constant 0 : index
    %c2 = arith.constant 2 : index
    %2 = vector.load %arg1[%c0_2, %c2] : memref<8x4xf32, #tpu.memory_space<vmem>>, vector<8x1xf32>
    %c0_3 = arith.constant 0 : index
    %c3 = arith.constant 3 : index
    %3 = vector.load %arg1[%c0_3, %c3] : memref<8x4xf32, #tpu.memory_space<vmem>>, vector<8x1xf32>
    %c2_4 = arith.constant 2 : index
    %c0_5 = arith.constant 0 : index
    %4 = vector.load %arg2[%c2_4, %c0_5] : memref<3x128xf32, #tpu.memory_space<vmem>>, vector<1x128xf32>
    %5 = vector.broadcast %0 : vector<8x1xf32> to vector<8x128xf32>
    %6 = vector.broadcast %4 : vector<1x128xf32> to vector<8x128xf32>
    %7 = arith.mulf %5, %6 : vector<8x128xf32>
    %8 = vector.broadcast %1 : vector<8x1xf32> to vector<8x128xf32>
    %9 = arith.addf %7, %8 : vector<8x128xf32>
    %10 = math.cos %9 : vector<8x128xf32>
    %11 = vector.broadcast %2 : vector<8x1xf32> to vector<8x128xf32>
    %12 = arith.mulf %10, %11 : vector<8x128xf32>
    %cst = arith.constant dense<0.000000e+00> : vector<128xf32>
    %13 = vector.multi_reduction <add>, %12, %cst [0] : vector<8x128xf32> to vector<128xf32>
    %14 = vector.shape_cast %13 : vector<128xf32> to vector<1x128xf32>
    %15 = vector.broadcast %3 : vector<8x1xf32> to vector<8x128xf32>
    %16 = arith.mulf %10, %15 : vector<8x128xf32>
    %cst_6 = arith.constant dense<0.000000e+00> : vector<128xf32>
    %17 = vector.multi_reduction <add>, %16, %cst_6 [0] : vector<8x128xf32> to vector<128xf32>
    %18 = vector.shape_cast %17 : vector<128xf32> to vector<1x128xf32>
    %c0_7 = arith.constant 0 : index
    %c0_8 = arith.constant 0 : index
    %19 = vector.load %arg2[%c0_7, %c0_8] : memref<3x128xf32, #tpu.memory_space<vmem>>, vector<1x128xf32>
    %20 = arith.addf %19, %14 : vector<1x128xf32>
    %c0_9 = arith.constant 0 : index
    %c0_10 = arith.constant 0 : index
    %21 = vector.load %arg3[%c0_9, %c0_10] : memref<2x128xf32, #tpu.memory_space<vmem>>, vector<1x128xf32>
    tpu.vector_store %arg3[%c0_9, %c0_10], %20 {strides = array<i32>} : memref<2x128xf32, #tpu.memory_space<vmem>>, vector<1x128xf32>,
    %c1_11 = arith.constant 1 : index
    %c0_12 = arith.constant 0 : index
    %22 = vector.load %arg2[%c1_11, %c0_12] : memref<3x128xf32, #tpu.memory_space<vmem>>, vector<1x128xf32>
    %23 = arith.addf %22, %18 : vector<1x128xf32>
    %c1_13 = arith.constant 1 : index
    %c0_14 = arith.constant 0 : index
    %24 = vector.load %arg3[%c1_13, %c0_14] : memref<2x128xf32, #tpu.memory_space<vmem>>, vector<1x128xf32>
    tpu.vector_store %arg3[%c1_13, %c0_14], %23 {strides = array<i32>} : memref<2x128xf32, #tpu.memory_space<vmem>>, vector<1x128xf32>,
    return
  }
  func.func @transform_0(%arg0: i32) -> (i32, i32) {
    %c0_i32 = arith.constant 0 : i32
    %c0_i32_0 = arith.constant 0 : i32
    %c0_i32_1 = arith.constant 0 : i32
    return %c0_i32, %c0_i32_0 : i32, i32
  }
  func.func @transform_1(%arg0: i32) -> (i32, i32) {
    %c0_i32 = arith.constant 0 : i32
    %c0_i32_0 = arith.constant 0 : i32
    return %c0_i32, %arg0 : i32, i32
  }
  func.func @transform_2(%arg0: i32) -> (i32, i32) {
    %c0_i32 = arith.constant 0 : i32
    %c0_i32_0 = arith.constant 0 : i32
    return %c0_i32, %arg0 : i32, i32
  }
}

</mosaic_0001>

<llo_original>
// kernel: releminer_forward.1
$region0: #{releminer_forward.1}
  #allocation0 [shape = 'u32[]', space=smem, size = 0x4, offset = 0x4, fixed_abs, tag = 'smem constant byte address 0x4 - core index']
  #allocation1 [shape = 'u32[72,128]{1,0:T(1,128)}', space=vmem, size = 0x9000, scoped, tag = 'internal scratch']
  %s0 = inlined_call_operand.vmem [shape: f32[8,4], index: 0, kind: input, shape index: {}]
  %s1 = inlined_call_operand.vmem [shape: f32[3,300], index: 1, kind: input, shape index: {}]
  %s2 = inlined_call_operand.hbm [shape: f32[2,300], index: 2, kind: output, shape index: {}]
  %s3 = sld [smem:[#allocation0]]
  $region41: #{releminer_forward.1} parent=0
    _
  %s5 = ssub.s32 1, %s3
  %s6 = scalar_select 0, %s5, %s3
  $region1: #{releminer_forward.1} parent=0
    #allocation2 [shape = 'u8[2048]{0}', space=vmem, size = 0x800, scoped, tag = 'output window, operand 0']
    #allocation3 [shape = 's32[2]{0}', space=sflag, size = 0x8, scoped, tag = 'scoped memory for releminer_forward.1']
    %7 = vsyncpa [#allocation3], 0
    %s8 = scalar_lea.sflag [#allocation3], 1
    %9 = vsyncpa %s8, 0
    loop: start=0, step=1, limit=5
    $region2: #{releminer_forward.1} parent=1 // loop_pre_header
      _
    $region3: #{releminer_forward.1} parent=1 // loop_header
      %s11 = sphi 0, %s15
      %p12 = scmp.ge.s32.totalorder %s11, 5
      %s19 = sphi 0, %s19
      %s21 = sphi 0, %s19
      %s22 = sphi 0, %s21
      %s36 = sphi 0, %s22
      %s42 = sphi 0, %s44
      %s45 = sphi 0, %s42
      %s46 = sphi 0, %s45
      %s62 = sphi 0, %s46
      %s68 = sphi 0, %s70
      %s71 = sphi 0, %s68
      %s72 = sphi 0, %s71
      %s88 = sphi 0, %s72
    $region4: #{releminer_forward.1} parent=1 // loop_header_branch
      %14 = sbr.rel (%p12) target = $region8
    $region5: #{releminer_forward.1} parent=1 // loop_body
      %s16 = ssub.s32 %s11, 1
      %s17 = ssub.s32 %s11, 2
      %s18 = sadd.s32 %s11, 1
      %s20 = sadd.s32 %s19, 1
      %p23 = scmp.eq.s32.totalorder %s11, 2
      %p24 = scmp.ne.s32.totalorder %s19, %s21
      %p25 = scmp.eq.s32.totalorder %s11, 0
      %p26 = por %p24, %p25
      %p27 = scmp.ne.s32.totalorder %s19, %s21
      %p28 = scmp.eq.s32.totalorder %s16, 2
      %p29 = por %p27, %p28
      %p30 = scmp.ne.s32.totalorder %s21, %s22
      %p31 = scmp.eq.s32.totalorder %s16, 0
      %p32 = por %p30, %p31
      %p33 = scmp.ne.s32.totalorder %s21, %s22
      %p34 = scmp.eq.s32.totalorder %s17, 2
      %p35 = por %p33, %p34
      %p37 = scmp.ne.s32.totalorder %s22, %s36
      %p38 = scmp.eq.s32.totalorder %s17, 0
      %p39 = por %p37, %p38
      %s40 = ssub.s32 %s11, %s18
      %p41 = scmp.eq.s32.totalorder %s40, 0
      %s43 = sadd.s32 %s42, 1
      %s44 = scalar_select %p41, %s42, %s43
      %p47 = pneg %p41
      %p48 = scmp.eq.s32.totalorder %s11, 2
      %p49 = por %p47, %p48
      %p50 = scmp.ne.s32.totalorder %s42, %s45
      %p51 = scmp.eq.s32.totalorder %s11, 0
      %p52 = por %p50, %p51
      %p53 = scmp.ne.s32.totalorder %s42, %s45
      %p54 = scmp.eq.s32.totalorder %s16, 2
      %p55 = por %p53, %p54
      %p56 = scmp.ne.s32.totalorder %s45, %s46
      %p57 = scmp.eq.s32.totalorder %s16, 0
      %p58 = por %p56, %p57
      %p59 = scmp.ne.s32.totalorder %s45, %s46
      %p60 = scmp.eq.s32.totalorder %s17, 2
      %p61 = por %p59, %p60
      %p63 = scmp.ne.s32.totalorder %s46, %s62
      %p64 = scmp.eq.s32.totalorder %s17, 0
      %p65 = por %p63, %p64
      %s66 = ssub.s32 %s11, %s18
      %p67 = scmp.eq.s32.totalorder %s66, 0
      %s69 = sadd.s32 %s68, 1
      %s70 = scalar_select %p67, %s68, %s69
      %p73 = pneg %p67
      %p74 = scmp.eq.s32.totalorder %s11, 2
      %p75 = por %p73, %p74
      %p76 = scmp.ne.s32.totalorder %s68, %s71
      %p77 = scmp.eq.s32.totalorder %s11, 0
      %p78 = por %p76, %p77
      %p79 = scmp.ne.s32.totalorder %s68, %s71
      %p80 = scmp.eq.s32.totalorder %s16, 2
      %p81 = por %p79, %p80
      %p82 = scmp.ne.s32.totalorder %s71, %s72
      %p83 = scmp.eq.s32.totalorder %s16, 0
      %p84 = por %p82, %p83
      %p85 = scmp.ne.s32.totalorder %s71, %s72
      %p86 = scmp.eq.s32.totalorder %s17, 2
      %p87 = por %p85, %p86
      %p89 = scmp.ne.s32.totalorder %s72, %s88
      %p90 = scmp.eq.s32.totalorder %s17, 0
      %p91 = por %p89, %p90
      %p92 = scmp.le.s32.totalorder 1, %s11
      %p93 = scmp.lt.s32.totalorder %s11, 4
      %p94 = pnand %p92, %p93
      %p95 = pneg %p94
      // Predicated region
      $region9: #{releminer_forward.1} parent=5 // pred_check
        _
      $region10: #{releminer_forward.1} parent=5 // pred_check_branch
        %97 = sbr.rel (%p94) target = $region12
      $region11: #{releminer_forward.1} parent=5 // pred_region
        %s98 = ssub.s32 %s11, 1
        // Predicated region
        $region13: #{releminer_forward.1} parent=11 // pred_check
          %p99 = pneg %p32
        $region14: #{releminer_forward.1} parent=11 // pred_check_branch
          %101 = sbr.rel (%p99) target = $region16
        $region15: #{releminer_forward.1} parent=11 // pred_region
          _
        $region16: #{releminer_forward.1} parent=11 // pred_fallthru
          _
      $region12: #{releminer_forward.1} parent=5 // pred_fallthru
        _
      %p102 = scmp.lt.s32.totalorder %s11, 3
      // Predicated region
      $region17: #{releminer_forward.1} parent=5 // pred_check
        %p103 = pneg %p102
      $region18: #{releminer_forward.1} parent=5 // pred_check_branch
        %105 = sbr.rel (%p103) target = $region20
      $region19: #{releminer_forward.1} parent=5 // pred_region
        // Predicated region
        $region21: #{releminer_forward.1} parent=19 // pred_check
          %p106 = pneg %p52
        $region22: #{releminer_forward.1} parent=19 // pred_check_branch
          %108 = sbr.rel (%p106) target = $region24
        $region23: #{releminer_forward.1} parent=19 // pred_region
          %p109 = scmp.lt.s32.totalorder %s11, 2
          %s110 = scalar_select %p109, %s11, 2
          %s111 = smul.addr %s110, 4
          %s112 = scalar_lea.vmem %s1, %s111
        $region24: #{releminer_forward.1} parent=19 // pred_fallthru
          _
      $region20: #{releminer_forward.1} parent=5 // pred_fallthru
        _
      %p113 = scmp.le.s32.totalorder 1, %s11
      %p114 = scmp.lt.s32.totalorder %s11, 4
      %p115 = pnand %p113, %p114
      %p116 = pneg %p115
      // Predicated region
      $region25: #{releminer_forward.1} parent=5 // pred_check
        _
      $region26: #{releminer_forward.1} parent=5 // pred_check_branch
        %118 = sbr.rel (%p115) target = $region28
      $region27: #{releminer_forward.1} parent=5 // pred_region
        %s119 = ssub.s32 %s11, 1
        %p120 = pneg %p32
        %p121 = pneg %p29
        %p122 = scmp.lt.s32.totalorder %s16, 2
        %s123 = scalar_select %p122, %s16, 2
        %s124 = smul.addr %s123, 4
        %s125 = scalar_lea.vmem %s1, %s124
        %p126 = pneg %p58
        %p127 = pneg %p55
        %p128 = pneg %p84
        %p129 = pneg %p81
        %s130 = sand.u32 %s71, 1
        %s131 = scalar_lea.sflag [#allocation3], %s130
        %s132 = sand.u32 %s71, 1
        %s133 = smul.addr %s132, 2
        %s134 = scalar_lea.vmem [#allocation2], %s133
        %p135 = scmp.lt.s32.totalorder %s16, 2
        %s136 = scalar_select %p135, %s16, 2
        %s137 = smul.addr %s136, 4
        %s138 = scalar_lea.vmem %s1, %s137
        %v139 = vld [vmem:[%s0] sm:$0xff]
        %v140 = vld [vmem:[%s138 + $0x2] sm:$0x1]
        %142 = vset.pattern.permute.xlu0 0
        %143 = vperm.xlu0 %142, %v139
        %v144 = vpop.permute.xlu0 %143
        %v146 = vperm.slane %v140, 0
        %v147 = vmul.f32 %v144, %v146
        %148 = vset.pattern.permute.xlu0 1
        %149 = vperm.xlu0 %148, %v139
        %v150 = vpop.permute.xlu0 %149
        %v152 = vadd.f32 %v147, %v150
        %v153 = vand.u32 2147483647, %v152
        %vm154 = vcmp.le.f32.partialorder %v153, 0.7853982
        %vm155 = vcmp.lt.s32.totalorder %v152, 0
        %v156 = vand.u32 %v152, 2139095040
        %v157 = vshrl.u32 %v156, 23
        %v158 = vsub.s32 %v157, 127
        %v159 = vand.u32 2147483647, %v152
        %v160 = vand.u32 %v159, 8388607
        %v161 = vor.u32 %v160, 8388608
        %v162 = vsub.s32 0, %v161
        %v163 = vadd.s32 %v158, 1
        %vm164 = vcmp.gt.s32.totalorder %v163, 0
        %v165 = vsel %vm164, %v163, 0
        %v166 = vshrl.u32 %v165, 5
        %v167 = vand.u32 %v165, 31
        %v168 = vsub.s32 32, %v167
        %v169 = vshrl.u32 683565275, %v168
        %v170 = vshll.u32 683565275, %v167
        %v171 = vshrl.u32 2475754826, %v168
        %v172 = vor.u32 %v170, %v171
        %v173 = vshll.u32 2475754826, %v167
        %v174 = vshrl.u32 2131351028, %v168
        %v175 = vor.u32 %v173, %v174
        %v176 = vshll.u32 2131351028, %v167
        %v177 = vshrl.u32 2102212464, %v168
        %v178 = vor.u32 %v176, %v177
        %v179 = vshll.u32 2102212464, %v167
        %v180 = vshrl.u32 920167782, %v168
        %v181 = vor.u32 %v179, %v180
        %v182 = vshll.u32 920167782, %v167
        %v183 = vshrl.u32 1326507024, %v168
        %v184 = vor.u32 %v182, %v183
        %vm185 = vcmp.lt.s32.totalorder %v166, 1
        %vm186 = vcmp.lt.s32.totalorder %v166, 2
        %vm187 = vcmp.lt.s32.totalorder %v166, 3
        %vm188 = vcmp.lt.s32.totalorder %v166, 4
        %v189 = vsel %vm185, %v169, %v172
        %v190 = vsel %vm188, %v178, 2102212464
        %v191 = vsel %vm187, %v175, %v190
        %v192 = vsel %vm186, %v189, %v191
        %v193 = vsel %vm185, %v172, %v175
        %v194 = vsel %vm188, %v181, 920167782
        %v195 = vsel %vm187, %v178, %v194
        %v196 = vsel %vm186, %v193, %v195
        %v197 = vsel %vm185, %v175, %v178
        %v198 = vsel %vm188, %v184, 1326507024
        %v199 = vsel %vm187, %v181, %v198
        %v200 = vsel %vm186, %v197, %v199
        %v201 = vshll.u32 %v161, 8
        %v202 = vand.u32 %v201, 65535
        %v203 = vshrl.u32 %v201, 16
        %v204 = vand.u32 %v200, 65535
        %v205 = vshrl.u32 %v200, 16
        %v206 = vmul.u32 %v202, %v204
        %v207 = vmul.u32 %v202, %v205
        %v208 = vmul.u32 %v203, %v204
        %v209 = vmul.u32 %v203, %v205
        %v210 = vshll.u32 %v207, 16
        %v211 = vshrl.u32 %v207, 16
        %v212 = vshll.u32 %v208, 16
        %v213 = vshrl.u32 %v208, 16
        %vm214 = vc.u32 %v206, %v210
        %v215 = vsel %vm214, 1, 0
        %v216 = vadd.s32 %v206, %v210
        %v217 = vadd.s32 %v209, %v215
        %vm218 = vc.u32 %v216, %v212
        %v219 = vsel %vm218, 1, 0
        %v220 = vadd.s32 %v216, %v212
        %v221 = vadd.s32 %v217, %v219
        %v222 = vadd.s32 %v221, %v211
        %v223 = vadd.s32 %v222, %v213
        %v224 = vand.u32 %v201, 65535
        %v225 = vshrl.u32 %v201, 16
        %v226 = vand.u32 %v196, 65535
        %v227 = vshrl.u32 %v196, 16
        %v228 = vmul.u32 %v224, %v226
        %v229 = vmul.u32 %v224, %v227
        %v230 = vmul.u32 %v225, %v226
        %v231 = vmul.u32 %v225, %v227
        %v232 = vshll.u32 %v229, 16
        %v233 = vshrl.u32 %v229, 16
        %v234 = vshll.u32 %v230, 16
        %v235 = vshrl.u32 %v230, 16
        %vm236 = vc.u32 %v228, %v232
        %v237 = vsel %vm236, 1, 0
        %v238 = vadd.s32 %v228, %v232
        %v239 = vadd.s32 %v231, %v237
        %vm240 = vc.u32 %v238, %v234
        %v241 = vsel %vm240, 1, 0
        %v242 = vadd.s32 %v238, %v234
        %v243 = vadd.s32 %v239, %v241
        %v244 = vadd.s32 %v243, %v233
        %v245 = vadd.s32 %v244, %v235
        %v246 = vmul.u32 %v201, %v192
        %v247 = vadd.s32 %v223, %v242
        %vm248 = vc.u32 %v223, %v242
        %v249 = vadd.s32 %v245, 1
        %v250 = vsel %vm248, %v249, %v245
        %v251 = vadd.s32 %v246, %v250
        %v252 = vadd.s32 %v251, 536870912
        %v253 = vshrl.u32 %v252, 30
        %v254 = vshll.u32 %v253, 30
        %v255 = vsub.s32 %v251, %v254
        %vm256 = vcmp.lt.s32.totalorder %v255, 0
        %v257 = vsub.s32 0, %v255
        %v258 = vsel %vm256, %v257, %v255
        %v259 = vclz %v258
        %v260 = vsub.s32 %v259, 2
        %vm261 = vcmp.gt.s32.totalorder 0, %v260
        %v262 = vsel %vm261, 0, %v260
        %v263 = vsub.s32 32, %v262
        %v264 = vshll.u32 %v255, %v262
        %v265 = vshrl.u32 %v247, %v263
        %v266 = vor.u32 %v264, %v265
        %v267 = vsub.s32 4294967266, %v262
        %v268 = vadd.s32 %v267, 127
        %v269 = vshll.u32 %v268, 23
        %v270 = vor.u32 4788187, %v269
        %v271 = vand.u32 2147483647, %v270
        %v273 = vcvt.s32.f32 %v266
        %v274 = vmul.f32 %v273, %v271
        %v275 = vxor.u32 %v274, 2147483648
        %v276 = vsel %vm155, %v275, %v274
        %v277 = vsub.s32 4, %v253
        %v278 = vsel %vm155, %v277, %v253
        %v279 = vsel %vm154, %v152, %v276
        %v280 = vsel %vm154, 0, %v278
        %v281 = vmul.f32 %v279, %v279
        %v282 = vmul.f32 %v281, -0.001358992
        %v283 = vadd.f32 %v282, 0.041655596
        %v284 = vmul.f32 %v281, %v283
        %v285 = vadd.f32 %v284, -0.4999988
        %v286 = vmul.f32 %v281, %v285
        %v287 = vadd.f32 1.0, %v286
        %v288 = vmul.f32 %v279, %v279
        %v289 = vmul.f32 %v288, -0.00019511016
        %v290 = vadd.f32 %v289, 0.008332121
        %v291 = vmul.f32 %v288, %v290
        %v292 = vadd.f32 %v291, -0.16666654
        %v293 = vmul.f32 %v288, %v292
        %v294 = vadd.f32 %v293, 1.0
        %v295 = vmul.f32 %v294, %v279
        %vm296 = vweird.f32 %v152
        %v297 = vand.u32 %v280, 3
        %vm298 = vcmp.lt.s32.totalorder %v297, 2
        %vm299 = vcmp.eq.s32.totalorder %v297, 0
        %v300 = vxor.u32 %v295, 2147483648
        %v301 = vsel %vm299, %v287, %v300
        %vm302 = vcmp.eq.s32.totalorder %v297, 2
        %v303 = vxor.u32 %v287, 2147483648
        %v304 = vsel %vm302, %v303, %v295
        %v305 = vsel %vm298, %v301, %v304
        %v306 = vsel %vm296, nan, %v305
        %307 = vset.pattern.permute.xlu0 2
        %308 = vperm.xlu0 %307, %v139
        %v309 = vpop.permute.xlu0 %308
        %v311 = vmul.f32 %v306, %v309
        %v312 = vrot.slane %v311, 4
        %v313 = vadd.f32 %v311, %v312
        %v314 = vrot.slane %v313, 2
        %v315 = vadd.f32 %v313, %v314
        %v316 = vrot.slane %v315, 1
        %v317 = vadd.f32 %v315, %v316
        %318 = vset.pattern.permute.xlu0 3
        %319 = vperm.xlu0 %318, %v139
        %v320 = vpop.permute.xlu0 %319
        %v322 = vmul.f32 %v306, %v320
        %v323 = vrot.slane %v322, 4
        %v324 = vadd.f32 %v322, %v323
        %v325 = vrot.slane %v324, 2
        %v326 = vadd.f32 %v324, %v325
        %v327 = vrot.slane %v326, 1
        %v328 = vadd.f32 %v326, %v327
        %v329 = vld [vmem:[%s138] sm:$0x1]
        %v330 = vadd.f32 %v329, %v317
        %331 = vst [vmem:[%s134] sm:$0x1] %v330
        %v332 = vld [vmem:[%s138 + $0x1] sm:$0x1]
        %v333 = vadd.f32 %v332, %v328
        %334 = vst [vmem:[%s134 + $0x1] sm:$0x1] %v333
        %s335 = sand.u32 %s71, 1
        %s336 = scalar_lea.sflag [#allocation3], %s335
        %s337 = sand.u32 %s71, 1
        %s338 = smul.addr %s337, 2
        %s339 = scalar_lea.vmem [#allocation2], %s338
        // Predicated region
        $region29: #{releminer_forward.1} parent=27 // pred_check
          %p340 = pneg %p81
        $region30: #{releminer_forward.1} parent=27 // pred_check_branch
          %342 = sbr.rel (%p340) target = $region32
        $region31: #{releminer_forward.1} parent=27 // pred_region
          %344 = vsyncadd %s336, 0
          %s345 = smul.addr %s16, 2
          %s346 = scalar_lea.hbm %s2, %s345
          %s348 = sshll.u32 %s339, 4
          %s349 = int_to_ptr.vmem [resolvable:$true] %s348
          %s350 = sshll.u32 %s346, 4
          %s351 = int_to_ptr.hbm [resolvable:$true] %s350
          %353 = dma.vmem_to_hbm [thread:$0]  %s349, 32, %s351, %s336
        $region32: #{releminer_forward.1} parent=27 // pred_fallthru
          _
      $region28: #{releminer_forward.1} parent=5 // pred_fallthru
        _
      %p354 = scmp.le.s32.totalorder 2, %s11
      // Predicated region
      $region33: #{releminer_forward.1} parent=5 // pred_check
        %p355 = pneg %p354
      $region34: #{releminer_forward.1} parent=5 // pred_check_branch
        %357 = sbr.rel (%p355) target = $region36
      $region35: #{releminer_forward.1} parent=5 // pred_region
        %s358 = ssub.s32 %s11, 2
        // Predicated region
        $region37: #{releminer_forward.1} parent=35 // pred_check
          %p359 = pneg %p87
        $region38: #{releminer_forward.1} parent=35 // pred_check_branch
          %361 = sbr.rel (%p359) target = $region40
        $region39: #{releminer_forward.1} parent=35 // pred_region
          %s362 = sand.u32 %s72, 1
          %s363 = scalar_lea.sflag [#allocation3], %s362
          %s364 = sand.u32 %s72, 1
          %s365 = smul.addr %s364, 2
          %s366 = scalar_lea.vmem [#allocation2], %s365
          %368 = dma.done %s363, 32
        $region40: #{releminer_forward.1} parent=35 // pred_fallthru
          _
      $region36: #{releminer_forward.1} parent=5 // pred_fallthru
        _
    $region6: #{releminer_forward.1} parent=1 // loop_footer
      %s15 = sadd.s32 1, %s11
    $region7: #{releminer_forward.1} parent=1 // loop_footer_branch
      %10 = sbr.rel target = $region3
    $region8: #{releminer_forward.1} parent=1 // loop_exit
      _
    %369 = vsyncpa [#allocation3], 1
    %s370 = scalar_lea.sflag [#allocation3], 1
    %371 = vsyncpa %s370, 1

</llo_original>
